<compile_context>
chip_gen: v6e
topology: v6e:2x2x1
jax: 0.10.0
libtpu: 0.0.40
codegen_flags: <defaults>
</compile_context>

<pallas_src>
import functools
import numpy as np
import jax
import jax.numpy as jnp
from jax.experimental import pallas as pl
from jax.experimental.pallas import tpu as pltpu

_BN_EPS = 1e-5


# ----------------------------------------------------------------------------
# Tiling helpers
# ----------------------------------------------------------------------------
def _round_up(x, m):
    return (x + m - 1) // m * m


def _choose_tk(k):
    """Return (tk, padded_K); both multiples of 128. Idempotent on padded_K."""
    kp = _round_up(k, 128)
    if kp <= 2048:
        return kp, kp                      # single-pass K
    q = kp // 128
    best = max(d for d in range(1, 17) if q % d == 0)
    if best * 128 >= 1024:
        return best * 128, kp              # exact divisor of Kp, no extra pad
    return 2048, _round_up(kp, 2048)       # pad K up to a multiple of 2048


def _pad_kn(k, n):
    _, kp = _choose_tk(k)
    return kp, _round_up(n, 128)


# ----------------------------------------------------------------------------
# Pallas kernel: batched tiled GEMM + per-output-channel affine + activation
# ----------------------------------------------------------------------------
def _mm_affine_kernel(a_ref, b_ref, s_ref, c_ref, o_ref, acc_ref, *, activation):
    @pl.when(pl.program_id(3) == 0)
    def _():
        acc_ref[...] = jnp.zeros_like(acc_ref)

    acc_ref[...] += jnp.dot(a_ref[0], b_ref[0],
                            preferred_element_type=jnp.float32)

    @pl.when(pl.program_id(3) == pl.num_programs(3) - 1)
    def _():
        y = acc_ref[...] * s_ref[...] + c_ref[...]
        if activation in ("relu", "relu_sigmoid"):
            y = jnp.maximum(y, 0.0)
        if activation in ("sigmoid", "relu_sigmoid"):
            y = jax.nn.sigmoid(y)
        o_ref[0] = y.astype(o_ref.dtype)


def gemm_affine(a, b, scale, bias, activation="none"):
    """act((a @ b) * scale + bias) per batch element.

    a: (B, M, Kp) bf16 ; b: (B, Kp, Np) bf16 ; scale/bias: (Np,) f32.
    Kp / Np must already be multiples of 128 (weights are pre-padded at init,
    activation K-padding is appended inside the im2col concat).
    Returns (B, M, Np) f32.
    """
    bsz, m, kp = a.shape
    _, kp2, np_ = b.shape
    assert kp == kp2 and kp % 128 == 0 and np_ % 128 == 0

    tk, kp_chk = _choose_tk(kp)
    assert kp_chk == kp
    tn = 256 if np_ % 256 == 0 else 128
    if m % 256 == 0:
        tm = 256
    elif m % 128 == 0:
        tm = 128
    elif m <= 256:
        tm = _round_up(m, 8)
    else:
        tm = 128
    mp = _round_up(m, tm)
    if mp != m:                      # never taken for this network's shapes
        a = jnp.pad(a, ((0, 0), (0, mp - m), (0, 0)))

    s2 = scale.reshape(1, np_).astype(jnp.float32)
    c2 = bias.reshape(1, np_).astype(jnp.float32)

    grid = (bsz, mp // tm, np_ // tn, kp // tk)
    kernel = functools.partial(_mm_affine_kernel, activation=activation)

    out = pl.pallas_call(
        kernel,
        out_shape=jax.ShapeDtypeStruct((bsz, mp, np_), jnp.float32),
        grid_spec=pltpu.PrefetchScalarGridSpec(
            num_scalar_prefetch=0,
            grid=grid,
            in_specs=[
                pl.BlockSpec((1, tm, tk), lambda p, i, j, k: (p, i, k)),
                pl.BlockSpec((1, tk, tn), lambda p, i, j, k: (p, k, j)),
                pl.BlockSpec((1, tn), lambda p, i, j, k: (0, j)),
                pl.BlockSpec((1, tn), lambda p, i, j, k: (0, j)),
            ],
            out_specs=pl.BlockSpec((1, tm, tn), lambda p, i, j, k: (p, i, j)),
            scratch_shapes=[pltpu.VMEM((tm, tn), jnp.float32)],
        ),
        compiler_params=pltpu.CompilerParams(
            dimension_semantics=("parallel", "parallel", "parallel",
                                 "arbitrary")),
    )(a, b, s2, c2)
    if mp != m:
        out = out[:, :m, :]
    return out


# ----------------------------------------------------------------------------
# Conv / ConvTranspose / pooling glue (im2col only; all GEMMs are Pallas)
# ----------------------------------------------------------------------------
def _im2col_3x3(x, kp):
    """(N,D,H,W,C) -> (N*D*H*W, kp) bf16 patch matrix (zero K-padded)."""
    x = x.astype(jnp.bfloat16)
    n, d, h, w, c = x.shape
    xp = jnp.pad(x, ((0, 0), (1, 1), (1, 1), (1, 1), (0, 0)))
    cols = [xp[:, kd:kd + d, kh:kh + h, kw:kw + w, :]
            for kd in range(3) for kh in range(3) for kw in range(3)]
    if kp > 27 * c:
        cols.append(jnp.zeros((n, d, h, w, kp - 27 * c), jnp.bfloat16))
    return jnp.concatenate(cols, axis=-1).reshape(n * d * h * w, kp)


def conv3d_3x3(x, layer, activation="none"):
    """Conv3d(k=3, s=1, p=1) + folded BN affine + activation."""
    n, d, h, w, _ = x.shape
    kp, _ = layer["wm"].shape
    a = _im2col_3x3(x, kp)
    y = gemm_affine(a[None], layer["wm"][None], layer["scale"], layer["bias"],
                    activation)
    cout = layer["cout"]
    return y[0, :, :cout].reshape(n, d, h, w, cout)


def _convt_subpixel_cols(x, kp):
    """Sub-pixel im2col for ConvTranspose3d(k=4,s=2,p=1): (8, N*D*H*W, kp)."""
    x = x.astype(jnp.bfloat16)
    n, d, h, w, c = x.shape
    xp = jnp.pad(x, ((0, 0), (1, 1), (1, 1), (1, 1), (0, 0)))
    mats = []
    for pd in range(2):
        for ph in range(2):
            for pw in range(2):
                cols = [xp[:, pd + td:pd + td + d, ph + th:ph + th + h,
                           pw + tw:pw + tw + w, :]
                        for td in range(2) for th in range(2)
                        for tw in range(2)]
                if kp > 8 * c:
                    cols.append(jnp.zeros((n, d, h, w, kp - 8 * c),
                                          jnp.bfloat16))
                mats.append(jnp.concatenate(cols, axis=-1)
                            .reshape(n * d * h * w, kp))
    return jnp.stack(mats, axis=0)


def conv_transpose3d_k4s2p1(x, layer):
    """ConvTranspose3d(k=4, s=2, p=1): 8 parity GEMMs in one pallas_call.

    out[n, 2j+p, ..., co] = bias[co]
        + sum_t x_window(j, offset=p+t) @ w[3-2t-p, ...]   (per spatial dim)
    so each output voxel is produced by exactly one K=8*Cin GEMM (no col2im).
    """
    n, d, h, w, _ = x.shape
    _, kp, _ = layer["wm"].shape
    a = _convt_subpixel_cols(x, kp)                       # (8, M, kp)
    y = gemm_affine(a, layer["wm"], layer["scale"], layer["bias"], "none")
    cout = layer["cout"]
    y = y[:, :, :cout].reshape(2, 2, 2, n, d, h, w, cout)
    y = jnp.transpose(y, (3, 4, 0, 5, 1, 6, 2, 7))        # (n,jd,pd,jh,ph,jw,pw,c)
    return y.reshape(n, 2 * d, 2 * h, 2 * w, cout)


def pool2(x, op):
    """MaxPool3d(2) / AvgPool3d(2)."""
    n, d, h, w, c = x.shape
    xr = x.reshape(n, d // 2, 2, h // 2, 2, w // 2, 2, c)
    if op == "max":
        return xr.max(axis=(2, 4, 6))
    return xr.mean(axis=(2, 4, 6))


# ----------------------------------------------------------------------------
# Parameter init (deterministic, synthetic). Weight GEMM matrices are
# pre-reshaped, zero-padded to the Pallas tile grid, and cast to bf16 once.
# ----------------------------------------------------------------------------
def _conv_layer(key, cin, cout, use_bn=True, bias=None):
    k = 27 * cin
    kp, np_ = _pad_kn(k, cout)
    w = jax.random.normal(key, (3, 3, 3, cin, cout), jnp.float32) \
        * np.sqrt(2.0 / k)
    wm = jnp.pad(w.reshape(k, cout), ((0, kp - k), (0, np_ - cout)))
    if use_bn:
        # Inference BatchNorm folded: gamma=1, beta=0, running mean=0, var=1.
        scale = jnp.full((np_,), 1.0 / np.sqrt(1.0 + _BN_EPS), jnp.float32)
        bvec = jnp.zeros((np_,), jnp.float32)
    else:
        scale = jnp.ones((np_,), jnp.float32)
        b = bias if bias is not None else jnp.zeros((cout,), jnp.float32)
        bvec = jnp.pad(b.astype(jnp.float32), (0, np_ - cout))
    return {"wm": wm.astype(jnp.bfloat16), "scale": scale, "bias": bvec,
            "cout": cout}


def init_double_conv(key, cin, cout):
    k1, k2 = jax.random.split(key)
    return {"c1": _conv_layer(k1, cin, cout),
            "c2": _conv_layer(k2, cout, cout)}


def apply_double_conv(p, x, final_act="relu"):
    x = conv3d_3x3(x, p["c1"], "relu")
    # Dropout3d(p=0.6): identity in inference mode.
    x = conv3d_3x3(x, p["c2"], final_act)
    return x


def init_convT(key, cin, cout):
    kw, kb = jax.random.split(key)
    w = jax.random.normal(kw, (4, 4, 4, cin, cout), jnp.float32) \
        * np.sqrt(1.0 / (64 * cin))
    b = jax.random.normal(kb, (cout,), jnp.float32) * 0.01
    k = 8 * cin
    kp, np_ = _pad_kn(k, cout)
    mats = []
    for pd in range(2):
        for ph in range(2):
            for pw in range(2):
                taps = [w[3 - 2 * td - pd, 3 - 2 * th - ph, 3 - 2 * tw - pw]
                        for td in range(2) for th in range(2)
                        for tw in range(2)]
                m = jnp.concatenate(taps, axis=0)          # (8*cin, cout)
                mats.append(jnp.pad(m, ((0, kp - k), (0, np_ - cout))))
    return {"wm": jnp.stack(mats, axis=0).astype(jnp.bfloat16),  # (8, kp, np_)
            "scale": jnp.ones((np_,), jnp.float32),
            "bias": jnp.pad(b, (0, np_ - cout)),
            "cout": cout}


def init_unet(key, in_ch):
    ks = iter(jax.random.split(key, 24))
    p = {}
    p["in0"] = init_double_conv(next(ks), in_ch, 64)
    p["in1"] = init_double_conv(next(ks), in_ch, 64)
    p["in2"] = init_double_conv(next(ks), in_ch, 64)
    p["in3"] = init_double_conv(next(ks), in_ch, 64)
    p["down1"] = init_double_conv(next(ks), 64 + 64, 128)
    p["down2"] = init_double_conv(next(ks), 128 + 64, 256)
    p["down3"] = init_double_conv(next(ks), 256 + 64, 512)
    p["up3_t"] = init_convT(next(ks), 512, 256)
    p["up3_c"] = init_double_conv(next(ks), 512, 256)
    p["up2_t"] = init_convT(next(ks), 256, 128)
    p["up2_c"] = init_double_conv(next(ks), 256, 128)
    p["up1_t"] = init_convT(next(ks), 128, 64)
    p["up1_c"] = init_double_conv(next(ks), 128, 64)
    p["out"] = _conv_layer(next(ks), 64, 1, use_bn=False,
                           bias=jnp.zeros((1,), jnp.float32))
    p["aux2a_t"] = init_convT(next(ks), 256, 256)
    p["aux2a_c"] = init_double_conv(next(ks), 256, 1)
    p["aux2b_t"] = init_convT(next(ks), 1, 1)
    p["aux2b_c"] = init_double_conv(next(ks), 1, 1)
    p["aux1_t"] = init_convT(next(ks), 128, 128)
    p["aux1_c"] = init_double_conv(next(ks), 128, 1)
    return p


# ----------------------------------------------------------------------------
# Full forward pass (matches Unet_3d.forward)
# ----------------------------------------------------------------------------
def unet3d_forward(p, x_ncdhw):
    x = jnp.transpose(x_ncdhw, (0, 2, 3, 4, 1))           # NCDHW -> NDHWC

    in1 = pool2(x, "avg")
    in2 = pool2(in1, "avg")
    in3 = pool2(in2, "avg")
    in1 = apply_double_conv(p["in1"], in1)
    in2 = apply_double_conv(p["in2"], in2)
    in3 = apply_double_conv(p["in3"], in3)
    x0 = apply_double_conv(p["in0"], x)

    x1 = apply_double_conv(p["down1"],
                           jnp.concatenate([pool2(x0, "max"), in1], -1))
    x2 = apply_double_conv(p["down2"],
                           jnp.concatenate([pool2(x1, "max"), in2], -1))
    x3 = apply_double_conv(p["down3"],
                           jnp.concatenate([pool2(x2, "max"), in3], -1))

    u = conv_transpose3d_k4s2p1(x3, p["up3_t"])
    y2 = apply_double_conv(p["up3_c"], jnp.concatenate([x2, u], -1))
    u = conv_transpose3d_k4s2p1(y2, p["up2_t"])
    y1 = apply_double_conv(p["up2_c"], jnp.concatenate([x1, u], -1))
    u = conv_transpose3d_k4s2p1(y1, p["up1_t"])
    y0 = apply_double_conv(p["up1_c"], jnp.concatenate([x0, u], -1))

    # aux2 = decoder(256,1) -> decoder(1,1); double_conv ends in ReLU, then the
    # module applies sigmoid on top (fused into the last conv epilogue).
    a = conv_transpose3d_k4s2p1(y2, p["aux2a_t"])
    a = apply_double_conv(p["aux2a_c"], a)
    a = conv_transpose3d_k4s2p1(a, p["aux2b_t"])
    aux2 = apply_double_conv(p["aux2b_c"], a, final_act="relu_sigmoid")

    # aux1 = decoder(128,1)
    a = conv_transpose3d_k4s2p1(y1, p["aux1_t"])
    aux1 = apply_double_conv(p["aux1_c"], a, final_act="relu_sigmoid")

    pred = conv3d_3x3(y0, p["out"], "sigmoid")

    to_ncdhw = lambda t: jnp.transpose(t, (0, 4, 1, 2, 3))
    return to_ncdhw(pred), to_ncdhw(aux2), to_ncdhw(aux1)


if __name__ == "__main__":
    key = jax.random.PRNGKey(0)
    pkey, xkey, tkey = jax.random.split(key, 3)

    # Quick correctness check of the fused Pallas GEMM kernel against jnp.
    ka, kb_, ks, kc = jax.random.split(tkey, 4)
    at = jax.random.normal(ka, (256, 384), jnp.float32).astype(jnp.bfloat16)
    bt = jax.random.normal(kb_, (384, 128), jnp.float32).astype(jnp.bfloat16)
    st = jax.random.normal(ks, (128,), jnp.float32)
    ct = jax.random.normal(kc, (128,), jnp.float32)
    got = gemm_affine(at[None], bt[None], st, ct, "relu")[0]
    ref = jnp.maximum(at.astype(jnp.float32) @ bt.astype(jnp.float32) * st + ct,
                      0.0)
    assert bool(jnp.allclose(got, ref, rtol=2e-2, atol=2e-2))

    in_channel = 1
    params = init_unet(pkey, in_channel)
    # Small input consistent with the module: NCDHW, spatial divisible by 8.
    x = jax.random.normal(xkey, (1, in_channel, 16, 16, 16), jnp.float32)

    fwd = jax.jit(functools.partial(unet3d_forward, params))
    pred, aux2, aux1 = fwd(x)
    jax.block_until_ready((pred, aux2, aux1))

    assert pred.shape == (1, 1, 16, 16, 16)
    assert aux2.shape == (1, 1, 16, 16, 16)
    assert aux1.shape == (1, 1, 16, 16, 16)
    assert bool(jnp.all(jnp.isfinite(pred)))
    assert bool(jnp.all(jnp.isfinite(aux2)))
    assert bool(jnp.all(jnp.isfinite(aux1)))
    print("KERNEL_OK")
</pallas_src>

<mosaic_0001>
module attributes {stable_mosaic.version = 11 : i64} {
  func.func @_mm_affine_kernel(%arg0: i32, %arg1: i32, %arg2: i32, %arg3: i32, %arg4: memref<1x256x384xbf16, #tpu.memory_space<vmem>>, %arg5: memref<1x384x128xbf16, #tpu.memory_space<vmem>>, %arg6: memref<1x128xf32, #tpu.memory_space<vmem>>, %arg7: memref<1x128xf32, #tpu.memory_space<vmem>>, %arg8: memref<1x256x128xf32, #tpu.memory_space<vmem>>, %arg9: memref<256x128xf32, #tpu.memory_space<vmem>>) attributes {dimension_semantics = [#tpu.dimension_semantics<parallel>, #tpu.dimension_semantics<parallel>, #tpu.dimension_semantics<parallel>, #tpu.dimension_semantics<arbitrary>], iteration_bounds = array<i64: 1, 1, 1, 1>, scalar_prefetch = 0 : i64, scratch_operands = 1 : i64, tpu.core_type = #tpu.core_type<tc>, window_params = [{transform_indices = @transform_0, window_bounds = array<i64: 1, 256, 384>}, {transform_indices = @transform_1, window_bounds = array<i64: 1, 384, 128>}, {transform_indices = @transform_2, window_bounds = array<i64: 1, 128>}, {transform_indices = @transform_3, window_bounds = array<i64: 1, 128>}, {transform_indices = @transform_4, window_bounds = array<i64: 1, 256, 128>}]} {
    %c0_i32 = arith.constant 0 : i32
    %0 = arith.cmpi eq, %arg3, %c0_i32 : i32
    %1 = arith.extui %0 : i1 to i32
    %c0_i32_0 = arith.constant 0 : i32
    %2 = arith.cmpi ne, %1, %c0_i32_0 : i32
    scf.if %2 {
      %cst_12 = arith.constant 0.000000e+00 : f32
      %14 = vector.broadcast %cst_12 : f32 to vector<256x128xf32>
      %c0_13 = arith.constant 0 : index
      %c0_14 = arith.constant 0 : index
      %15 = vector.load %arg9[%c0_13, %c0_14] : memref<256x128xf32, #tpu.memory_space<vmem>>, vector<256x128xf32>
      tpu.vector_store %arg9[%c0_13, %c0_14], %14 {strides = array<i32>} : memref<256x128xf32, #tpu.memory_space<vmem>>, vector<256x128xf32>,
    } else {
    }
    %c0 = arith.constant 0 : index
    %c0_1 = arith.constant 0 : index
    %3 = vector.load %arg9[%c0, %c0_1] : memref<256x128xf32, #tpu.memory_space<vmem>>, vector<256x128xf32>
    %c0_2 = arith.constant 0 : index
    %c0_3 = arith.constant 0 : index
    %c0_4 = arith.constant 0 : index
    %4 = vector.load %arg4[%c0_2, %c0_3, %c0_4] : memref<1x256x384xbf16, #tpu.memory_space<vmem>>, vector<1x256x384xbf16>
    %5 = vector.shape_cast %4 : vector<1x256x384xbf16> to vector<256x384xbf16>
    %c0_5 = arith.constant 0 : index
    %c0_6 = arith.constant 0 : index
    %c0_7 = arith.constant 0 : index
    %6 = vector.load %arg5[%c0_5, %c0_6, %c0_7] : memref<1x384x128xbf16, #tpu.memory_space<vmem>>, vector<1x384x128xbf16>
    %7 = vector.shape_cast %6 : vector<1x384x128xbf16> to vector<384x128xbf16>
    %cst = arith.constant dense<0.000000e+00> : vector<256x128xf32>
    %8 = tpu.matmul %5, %7, %cst {dimension_numbers = #tpu.dot_dimension_numbers<[1], [0], [0], [1], [0, 0, 1, 1], [], []>} : vector<256x384xbf16>, vector<384x128xbf16>, vector<256x128xf32> -> vector<256x128xf32>
    %9 = arith.addf %3, %8 : vector<256x128xf32>
    %c0_8 = arith.constant 0 : index
    %c0_9 = arith.constant 0 : index
    %10 = vector.load %arg9[%c0_8, %c0_9] : memref<256x128xf32, #tpu.memory_space<vmem>>, vector<256x128xf32>
    tpu.vector_store %arg9[%c0_8, %c0_9], %9 {strides = array<i32>} : memref<256x128xf32, #tpu.memory_space<vmem>>, vector<256x128xf32>,
    %c0_i32_10 = arith.constant 0 : i32
    %11 = arith.cmpi eq, %arg3, %c0_i32_10 : i32
    %12 = arith.extui %11 : i1 to i32
    %c0_i32_11 = arith.constant 0 : i32
    %13 = arith.cmpi ne, %12, %c0_i32_11 : i32
    scf.if %13 {
      %c0_12 = arith.constant 0 : index
      %c0_13 = arith.constant 0 : index
      %14 = vector.load %arg9[%c0_12, %c0_13] : memref<256x128xf32, #tpu.memory_space<vmem>>, vector<256x128xf32>
      %c0_14 = arith.constant 0 : index
      %c0_15 = arith.constant 0 : index
      %15 = vector.load %arg6[%c0_14, %c0_15] : memref<1x128xf32, #tpu.memory_space<vmem>>, vector<1x128xf32>
      %16 = vector.broadcast %15 : vector<1x128xf32> to vector<256x128xf32>
      %17 = arith.mulf %14, %16 : vector<256x128xf32>
      %c0_16 = arith.constant 0 : index
      %c0_17 = arith.constant 0 : index
      %18 = vector.load %arg7[%c0_16, %c0_17] : memref<1x128xf32, #tpu.memory_space<vmem>>, vector<1x128xf32>
      %19 = vector.broadcast %18 : vector<1x128xf32> to vector<256x128xf32>
      %20 = arith.addf %17, %19 : vector<256x128xf32>
      %cst_18 = arith.constant 0.000000e+00 : f32
      %21 = vector.broadcast %cst_18 : f32 to vector<256x128xf32>
      %22 = arith.maximumf %20, %21 : vector<256x128xf32>
      %c0_19 = arith.constant 0 : index
      %c0_20 = arith.constant 0 : index
      %c0_21 = arith.constant 0 : index
      %23 = vector.load %arg8[%c0_19, %c0_20, %c0_21] : memref<1x256x128xf32, #tpu.memory_space<vmem>>, vector<1x256x128xf32>
      %24 = vector.shape_cast %23 : vector<1x256x128xf32> to vector<256x128xf32>
      %25 = vector.shape_cast %22 : vector<256x128xf32> to vector<1x256x128xf32>
      tpu.vector_store %arg8[%c0_19, %c0_20, %c0_21], %25 {strides = array<i32>} : memref<1x256x128xf32, #tpu.memory_space<vmem>>, vector<1x256x128xf32>,
    } else {
    }
    return
  }
  func.func @transform_0(%arg0: i32, %arg1: i32, %arg2: i32, %arg3: i32) -> (i32, i32, i32) {
    %c0_i32 = arith.constant 0 : i32
    return %arg0, %arg1, %arg3 : i32, i32, i32
  }
  func.func @transform_1(%arg0: i32, %arg1: i32, %arg2: i32, %arg3: i32) -> (i32, i32, i32) {
    %c0_i32 = arith.constant 0 : i32
    return %arg0, %arg3, %arg2 : i32, i32, i32
  }
  func.func @transform_2(%arg0: i32, %arg1: i32, %arg2: i32, %arg3: i32) -> (i32, i32) {
    %c0_i32 = arith.constant 0 : i32
    %c0_i32_0 = arith.constant 0 : i32
    return %c0_i32, %arg2 : i32, i32
  }
  func.func @transform_3(%arg0: i32, %arg1: i32, %arg2: i32, %arg3: i32) -> (i32, i32) {
    %c0_i32 = arith.constant 0 : i32
    %c0_i32_0 = arith.constant 0 : i32
    return %c0_i32, %arg2 : i32, i32
  }
  func.func @transform_4(%arg0: i32, %arg1: i32, %arg2: i32, %arg3: i32) -> (i32, i32, i32) {
    %c0_i32 = arith.constant 0 : i32
    return %arg0, %arg1, %arg2 : i32, i32, i32
  }
}

</mosaic_0001>

<llo_original>
// kernel: tpu_custom_call.1
$region0: #{tpu_custom_call.1}
  #allocation0 [shape = 'u32[]', space=smem, size = 0x4, offset = 0x4, fixed_abs, tag = 'smem constant byte address 0x4 - core index']
  #allocation1 [shape = 'u32[144,128]{1,0:T(1,128)}', space=vmem, size = 0x12000, scoped, tag = 'internal scratch']
  #allocation2 [shape = 'f32[256,128]{1,0:T(8,128)}', space=vmem, size = 0x20000, scoped, tag = 'scratch operand']
  %s0 = inlined_call_operand.hbm [shape: bf16[1,256,384], index: 0, kind: input, shape index: {}]
  %s1 = inlined_call_operand.hbm [shape: bf16[1,384,128], index: 1, kind: input, shape index: {}]
  %s2 = inlined_call_operand.vmem [shape: f32[1,128], index: 2, kind: input, shape index: {}]
  %s3 = inlined_call_operand.vmem [shape: f32[1,128], index: 3, kind: input, shape index: {}]
  %s4 = inlined_call_operand.hbm [shape: f32[1,256,128], index: 4, kind: output, shape index: {}]
  %s5 = sld [smem:[#allocation0]]
  $region42: #{tpu_custom_call.1} parent=0
    _
  %s7 = ssub.s32 1, %s5
  %s8 = scalar_select 0, %s7, %s5
  $region1: #{tpu_custom_call.1} parent=0
    #allocation3 [shape = 'u8[196608]{0}', space=vmem, size = 0x30000, scoped, tag = 'input window, operand 0, single buffered']
    #allocation4 [shape = 's32[1]{0}', space=sflag, size = 0x4, scoped, tag = 'scoped memory for tpu_custom_call.1']
    #allocation5 [shape = 's32[1]{0}', space=sflag, size = 0x4, scoped, tag = 'scoped memory for tpu_custom_call.1']
    #allocation6 [shape = 'u8[98304]{0}', space=vmem, size = 0x18000, scoped, tag = 'input window, operand 1, single buffered']
    #allocation7 [shape = 's32[1]{0}', space=sflag, size = 0x4, scoped, tag = 'scoped memory for tpu_custom_call.1']
    #allocation8 [shape = 'u8[131072]{0}', space=vmem, size = 0x20000, scoped, tag = 'output window, operand 0, single buffered']
    %9 = vsyncpa [#allocation4], 0
    %10 = vsyncpa [#allocation7], 0
    %11 = vsyncpa [#allocation5], 0
    // Predicated region
    $region2: #{tpu_custom_call.1} parent=1 // pred_check
      _
    $region3: #{tpu_custom_call.1} parent=1 // pred_check_branch
      %13 = sbr.rel (0) target = $region5
    $region4: #{tpu_custom_call.1} parent=1 // pred_region
      %s15 = ssub.s32 6144, 6144
      %16 = vsyncadd [#allocation4], %s15
      %s17 = sshll.u32 [#allocation3], 4
      %s18 = int_to_ptr.vmem [resolvable:$true] %s17
      %23 = dma.hbm_to_vmem [thread:$0]  %s0, 6144, %s18, [#allocation4], 192, 192, 12
    $region5: #{tpu_custom_call.1} parent=1 // pred_fallthru
      _
    // Predicated region
    $region6: #{tpu_custom_call.1} parent=1 // pred_check
      _
    $region7: #{tpu_custom_call.1} parent=1 // pred_check_branch
      %25 = sbr.rel (0) target = $region9
    $region8: #{tpu_custom_call.1} parent=1 // pred_region
      %s27 = ssub.s32 3072, 3072
      %28 = vsyncadd [#allocation7], %s27
      %s29 = sshll.u32 [#allocation6], 4
      %s30 = int_to_ptr.vmem [resolvable:$true] %s29
      %35 = dma.hbm_to_vmem [thread:$0]  %s1, 3072, %s30, [#allocation7], 64, 64, 4
    $region9: #{tpu_custom_call.1} parent=1 // pred_fallthru
      _
    // Predicated region
    $region10: #{tpu_custom_call.1} parent=1 // pred_check
      _
    $region11: #{tpu_custom_call.1} parent=1 // pred_check_branch
      %37 = sbr.rel (0) target = $region13
    $region12: #{tpu_custom_call.1} parent=1 // pred_region
      _
    $region13: #{tpu_custom_call.1} parent=1 // pred_fallthru
      _
    // Predicated region
    $region14: #{tpu_custom_call.1} parent=1 // pred_check
      _
    $region15: #{tpu_custom_call.1} parent=1 // pred_check_branch
      %39 = sbr.rel (0) target = $region17
    $region16: #{tpu_custom_call.1} parent=1 // pred_region
      _
    $region17: #{tpu_custom_call.1} parent=1 // pred_fallthru
      _
    // Predicated region
    $region18: #{tpu_custom_call.1} parent=1 // pred_check
      _
    $region19: #{tpu_custom_call.1} parent=1 // pred_check_branch
      %41 = sbr.rel (0) target = $region21
    $region20: #{tpu_custom_call.1} parent=1 // pred_region
      %42 = dma.done [#allocation4], 6144
    $region21: #{tpu_custom_call.1} parent=1 // pred_fallthru
      _
    // Predicated region
    $region22: #{tpu_custom_call.1} parent=1 // pred_check
      _
    $region23: #{tpu_custom_call.1} parent=1 // pred_check_branch
      %44 = sbr.rel (0) target = $region25
    $region24: #{tpu_custom_call.1} parent=1 // pred_region
      %45 = dma.done [#allocation7], 3072
    $region25: #{tpu_custom_call.1} parent=1 // pred_fallthru
      _
    %p47 = scmp.eq.s32.totalorder 0, 0
    // Predicated region
    $region26: #{tpu_custom_call.1} parent=1 // pred_check
      %p48 = pneg %p47
    $region27: #{tpu_custom_call.1} parent=1 // pred_check_branch
      %50 = sbr.rel (%p48) target = $region29
    $region28: #{tpu_custom_call.1} parent=1 // pred_region
      %51 = vst [vmem:[#allocation2] sm:$0xff] 0.0
      %52 = vst [vmem:[#allocation2 + $0x8] sm:$0xff] 0.0
      %53 = vst [vmem:[#allocation2 + $0x10] sm:$0xff] 0.0
      %54 = vst [vmem:[#allocation2 + $0x18] sm:$0xff] 0.0
      %55 = vst [vmem:[#allocation2 + $0x20] sm:$0xff] 0.0
      %56 = vst [vmem:[#allocation2 + $0x28] sm:$0xff] 0.0
      %57 = vst [vmem:[#allocation2 + $0x30] sm:$0xff] 0.0
      %58 = vst [vmem:[#allocation2 + $0x38] sm:$0xff] 0.0
      %59 = vst [vmem:[#allocation2 + $0x40] sm:$0xff] 0.0
      %60 = vst [vmem:[#allocation2 + $0x48] sm:$0xff] 0.0
      %61 = vst [vmem:[#allocation2 + $0x50] sm:$0xff] 0.0
      %62 = vst [vmem:[#allocation2 + $0x58] sm:$0xff] 0.0
      %63 = vst [vmem:[#allocation2 + $0x60] sm:$0xff] 0.0
      %64 = vst [vmem:[#allocation2 + $0x68] sm:$0xff] 0.0
      %65 = vst [vmem:[#allocation2 + $0x70] sm:$0xff] 0.0
      %66 = vst [vmem:[#allocation2 + $0x78] sm:$0xff] 0.0
      %67 = vst [vmem:[#allocation2 + $0x80] sm:$0xff] 0.0
      %68 = vst [vmem:[#allocation2 + $0x88] sm:$0xff] 0.0
      %69 = vst [vmem:[#allocation2 + $0x90] sm:$0xff] 0.0
      %70 = vst [vmem:[#allocation2 + $0x98] sm:$0xff] 0.0
      %71 = vst [vmem:[#allocation2 + $0xa0] sm:$0xff] 0.0
      %72 = vst [vmem:[#allocation2 + $0xa8] sm:$0xff] 0.0
      %73 = vst [vmem:[#allocation2 + $0xb0] sm:$0xff] 0.0
      %74 = vst [vmem:[#allocation2 + $0xb8] sm:$0xff] 0.0
      %75 = vst [vmem:[#allocation2 + $0xc0] sm:$0xff] 0.0
      %76 = vst [vmem:[#allocation2 + $0xc8] sm:$0xff] 0.0
      %77 = vst [vmem:[#allocation2 + $0xd0] sm:$0xff] 0.0
      %78 = vst [vmem:[#allocation2 + $0xd8] sm:$0xff] 0.0
      %79 = vst [vmem:[#allocation2 + $0xe0] sm:$0xff] 0.0
      %80 = vst [vmem:[#allocation2 + $0xe8] sm:$0xff] 0.0
      %81 = vst [vmem:[#allocation2 + $0xf0] sm:$0xff] 0.0
      %82 = vst [vmem:[#allocation2 + $0xf8] sm:$0xff] 0.0
    $region29: #{tpu_custom_call.1} parent=1 // pred_fallthru
      _
    %v83 = vld [vmem:[#allocation2] sm:$0xff]
    %v84 = vld [vmem:[#allocation2 + $0x8] sm:$0xff]
    %v85 = vld [vmem:[#allocation2 + $0x10] sm:$0xff]
    %v86 = vld [vmem:[#allocation2 + $0x18] sm:$0xff]
    %v87 = vld [vmem:[#allocation2 + $0x20] sm:$0xff]
    %v88 = vld [vmem:[#allocation2 + $0x28] sm:$0xff]
    %v89 = vld [vmem:[#allocation2 + $0x30] sm:$0xff]
    %v90 = vld [vmem:[#allocation2 + $0x38] sm:$0xff]
    %v91 = vld [vmem:[#allocation2 + $0x40] sm:$0xff]
    %v92 = vld [vmem:[#allocation2 + $0x48] sm:$0xff]
    %v93 = vld [vmem:[#allocation2 + $0x50] sm:$0xff]
    %v94 = vld [vmem:[#allocation2 + $0x58] sm:$0xff]
    %v95 = vld [vmem:[#allocation2 + $0x60] sm:$0xff]
    %v96 = vld [vmem:[#allocation2 + $0x68] sm:$0xff]
    %v97 = vld [vmem:[#allocation2 + $0x70] sm:$0xff]
    %v98 = vld [vmem:[#allocation2 + $0x78] sm:$0xff]
    %v99 = vld [vmem:[#allocation2 + $0x80] sm:$0xff]
    %v100 = vld [vmem:[#allocation2 + $0x88] sm:$0xff]
    %v101 = vld [vmem:[#allocation2 + $0x90] sm:$0xff]
    %v102 = vld [vmem:[#allocation2 + $0x98] sm:$0xff]
    %v103 = vld [vmem:[#allocation2 + $0xa0] sm:$0xff]
    %v104 = vld [vmem:[#allocation2 + $0xa8] sm:$0xff]
    %v105 = vld [vmem:[#allocation2 + $0xb0] sm:$0xff]
    %v106 = vld [vmem:[#allocation2 + $0xb8] sm:$0xff]
    %v107 = vld [vmem:[#allocation2 + $0xc0] sm:$0xff]
    %v108 = vld [vmem:[#allocation2 + $0xc8] sm:$0xff]
    %v109 = vld [vmem:[#allocation2 + $0xd0] sm:$0xff]
    %v110 = vld [vmem:[#allocation2 + $0xd8] sm:$0xff]
    %v111 = vld [vmem:[#allocation2 + $0xe0] sm:$0xff]
    %v112 = vld [vmem:[#allocation2 + $0xe8] sm:$0xff]
    %v113 = vld [vmem:[#allocation2 + $0xf0] sm:$0xff]
    %v114 = vld [vmem:[#allocation2 + $0xf8] sm:$0xff]
    %v115 = vld [vmem:[#allocation3] sm:$0xff]
    %v116 = vld [vmem:[#allocation3 + $0x8] sm:$0xf]
    %v117 = vld [vmem:[#allocation3 + $0xc] sm:$0xff]
    %v118 = vld [vmem:[#allocation3 + $0x14] sm:$0xf]
    %v119 = vld [vmem:[#allocation3 + $0x18] sm:$0xff]
    %v120 = vld [vmem:[#allocation3 + $0x20] sm:$0xf]
    %v121 = vld [vmem:[#allocation3 + $0x24] sm:$0xff]
    %v122 = vld [vmem:[#allocation3 + $0x2c] sm:$0xf]
    %v123 = vld [vmem:[#allocation3 + $0x30] sm:$0xff]
    %v124 = vld [vmem:[#allocation3 + $0x38] sm:$0xf]
    %v125 = vld [vmem:[#allocation3 + $0x3c] sm:$0xff]
    %v126 = vld [vmem:[#allocation3 + $0x44] sm:$0xf]
    %v127 = vld [vmem:[#allocation3 + $0x48] sm:$0xff]
    %v128 = vld [vmem:[#allocation3 + $0x50] sm:$0xf]
    %v129 = vld [vmem:[#allocation3 + $0x54] sm:$0xff]
    %v130 = vld [vmem:[#allocation3 + $0x5c] sm:$0xf]
    %v131 = vld [vmem:[#allocation3 + $0x60] sm:$0xff]
    %v132 = vld [vmem:[#allocation3 + $0x68] sm:$0xf]
    %v133 = vld [vmem:[#allocation3 + $0x6c] sm:$0xff]
    %v134 = vld [vmem:[#allocation3 + $0x74] sm:$0xf]
    %v135 = vld [vmem:[#allocation3 + $0x78] sm:$0xff]
    %v136 = vld [vmem:[#allocation3 + $0x80] sm:$0xf]
    %v137 = vld [vmem:[#allocation3 + $0x84] sm:$0xff]
    %v138 = vld [vmem:[#allocation3 + $0x8c] sm:$0xf]
    %v139 = vld [vmem:[#allocation3 + $0x90] sm:$0xff]
    %v140 = vld [vmem:[#allocation3 + $0x98] sm:$0xf]
    %v141 = vld [vmem:[#allocation3 + $0x9c] sm:$0xff]
    %v142 = vld [vmem:[#allocation3 + $0xa4] sm:$0xf]
    %v143 = vld [vmem:[#allocation3 + $0xa8] sm:$0xff]
    %v144 = vld [vmem:[#allocation3 + $0xb0] sm:$0xf]
    %v145 = vld [vmem:[#allocation3 + $0xb4] sm:$0xff]
    %v146 = vld [vmem:[#allocation3 + $0xbc] sm:$0xf]
    %v147 = vld [vmem:[#allocation3 + $0xc0] sm:$0xff]
    %v148 = vld [vmem:[#allocation3 + $0xc8] sm:$0xf]
    %v149 = vld [vmem:[#allocation3 + $0xcc] sm:$0xff]
    %v150 = vld [vmem:[#allocation3 + $0xd4] sm:$0xf]
    %v151 = vld [vmem:[#allocation3 + $0xd8] sm:$0xff]
    %v152 = vld [vmem:[#allocation3 + $0xe0] sm:$0xf]
    %v153 = vld [vmem:[#allocation3 + $0xe4] sm:$0xff]
    %v154 = vld [vmem:[#allocation3 + $0xec] sm:$0xf]
    %v155 = vld [vmem:[#allocation3 + $0xf0] sm:$0xff]
    %v156 = vld [vmem:[#allocation3 + $0xf8] sm:$0xf]
    %v157 = vld [vmem:[#allocation3 + $0xfc] sm:$0xff]
    %v158 = vld [vmem:[#allocation3 + $0x104] sm:$0xf]
    %v159 = vld [vmem:[#allocation3 + $0x108] sm:$0xff]
    %v160 = vld [vmem:[#allocation3 + $0x110] sm:$0xf]
    %v161 = vld [vmem:[#allocation3 + $0x114] sm:$0xff]
    %v162 = vld [vmem:[#allocation3 + $0x11c] sm:$0xf]
    %v163 = vld [vmem:[#allocation3 + $0x120] sm:$0xff]
    %v164 = vld [vmem:[#allocation3 + $0x128] sm:$0xf]
    %v165 = vld [vmem:[#allocation3 + $0x12c] sm:$0xff]
    %v166 = vld [vmem:[#allocation3 + $0x134] sm:$0xf]
    %v167 = vld [vmem:[#allocation3 + $0x138] sm:$0xff]
    %v168 = vld [vmem:[#allocation3 + $0x140] sm:$0xf]
    %v169 = vld [vmem:[#allocation3 + $0x144] sm:$0xff]
    %v170 = vld [vmem:[#allocation3 + $0x14c] sm:$0xf]
    %v171 = vld [vmem:[#allocation3 + $0x150] sm:$0xff]
    %v172 = vld [vmem:[#allocation3 + $0x158] sm:$0xf]
    %v173 = vld [vmem:[#allocation3 + $0x15c] sm:$0xff]
    %v174 = vld [vmem:[#allocation3 + $0x164] sm:$0xf]
    %v175 = vld [vmem:[#allocation3 + $0x168] sm:$0xff]
    %v176 = vld [vmem:[#allocation3 + $0x170] sm:$0xf]
    %v177 = vld [vmem:[#allocation3 + $0x174] sm:$0xff]
    %v178 = vld [vmem:[#allocation3 + $0x17c] sm:$0xf]
    %v179 = vld [vmem:[#allocation6] sm:$0xf]
    %v180 = vld [vmem:[#allocation6 + $0x4] sm:$0xf]
    %v181 = vld [vmem:[#allocation6 + $0x8] sm:$0xf]
    %v182 = vld [vmem:[#allocation6 + $0xc] sm:$0xf]
    %v183 = vld [vmem:[#allocation6 + $0x10] sm:$0xf]
    %v184 = vld [vmem:[#allocation6 + $0x14] sm:$0xf]
    %v185 = vld [vmem:[#allocation6 + $0x18] sm:$0xf]
    %v186 = vld [vmem:[#allocation6 + $0x1c] sm:$0xf]
    %v187 = vld [vmem:[#allocation6 + $0x20] sm:$0xf]
    %v188 = vld [vmem:[#allocation6 + $0x24] sm:$0xf]
    %v189 = vld [vmem:[#allocation6 + $0x28] sm:$0xf]
    %v190 = vld [vmem:[#allocation6 + $0x2c] sm:$0xf]
    %v191 = vld [vmem:[#allocation6 + $0x30] sm:$0xf]
    %v192 = vld [vmem:[#allocation6 + $0x34] sm:$0xf]
    %v193 = vld [vmem:[#allocation6 + $0x38] sm:$0xf]
    %v194 = vld [vmem:[#allocation6 + $0x3c] sm:$0xf]
    %v195 = vld [vmem:[#allocation6 + $0x40] sm:$0xf]
    %v196 = vld [vmem:[#allocation6 + $0x44] sm:$0xf]
    %v197 = vld [vmem:[#allocation6 + $0x48] sm:$0xf]
    %v198 = vld [vmem:[#allocation6 + $0x4c] sm:$0xf]
    %v199 = vld [vmem:[#allocation6 + $0x50] sm:$0xf]
    %v200 = vld [vmem:[#allocation6 + $0x54] sm:$0xf]
    %v201 = vld [vmem:[#allocation6 + $0x58] sm:$0xf]
    %v202 = vld [vmem:[#allocation6 + $0x5c] sm:$0xf]
    %v203 = vld [vmem:[#allocation6 + $0x60] sm:$0xf]
    %v204 = vld [vmem:[#allocation6 + $0x64] sm:$0xf]
    %v205 = vld [vmem:[#allocation6 + $0x68] sm:$0xf]
    %v206 = vld [vmem:[#allocation6 + $0x6c] sm:$0xf]
    %v207 = vld [vmem:[#allocation6 + $0x70] sm:$0xf]
    %v208 = vld [vmem:[#allocation6 + $0x74] sm:$0xf]
    %v209 = vld [vmem:[#allocation6 + $0x78] sm:$0xf]
    %v210 = vld [vmem:[#allocation6 + $0x7c] sm:$0xf]
    %v211 = vld [vmem:[#allocation6 + $0x80] sm:$0xf]
    %v212 = vld [vmem:[#allocation6 + $0x84] sm:$0xf]
    %v213 = vld [vmem:[#allocation6 + $0x88] sm:$0xf]
    %v214 = vld [vmem:[#allocation6 + $0x8c] sm:$0xf]
    %v215 = vld [vmem:[#allocation6 + $0x90] sm:$0xf]
    %v216 = vld [vmem:[#allocation6 + $0x94] sm:$0xf]
    %v217 = vld [vmem:[#allocation6 + $0x98] sm:$0xf]
    %v218 = vld [vmem:[#allocation6 + $0x9c] sm:$0xf]
    %v219 = vld [vmem:[#allocation6 + $0xa0] sm:$0xf]
    %v220 = vld [vmem:[#allocation6 + $0xa4] sm:$0xf]
    %v221 = vld [vmem:[#allocation6 + $0xa8] sm:$0xf]
    %v222 = vld [vmem:[#allocation6 + $0xac] sm:$0xf]
    %v223 = vld [vmem:[#allocation6 + $0xb0] sm:$0xf]
    %v224 = vld [vmem:[#allocation6 + $0xb4] sm:$0xf]
    %v225 = vld [vmem:[#allocation6 + $0xb8] sm:$0xf]
    %v226 = vld [vmem:[#allocation6 + $0xbc] sm:$0xf]
    %v291 = vunpack.c.l.b16 %v115
    %v292 = vunpack.c.h.b16 %v115
    %v293 = vunpack.c.l.b16 %v116
    %v294 = vunpack.c.l.b16 %v117
    %v295 = vunpack.c.h.b16 %v117
    %v296 = vunpack.c.l.b16 %v118
    %v297 = vunpack.c.l.b16 %v119
    %v298 = vunpack.c.h.b16 %v119
    %v299 = vunpack.c.l.b16 %v120
    %v300 = vunpack.c.l.b16 %v121
    %v301 = vunpack.c.h.b16 %v121
    %v302 = vunpack.c.l.b16 %v122
    %v303 = vunpack.c.l.b16 %v123
    %v304 = vunpack.c.h.b16 %v123
    %v305 = vunpack.c.l.b16 %v124
    %v306 = vunpack.c.l.b16 %v125
    %v307 = vunpack.c.h.b16 %v125
    %v308 = vunpack.c.l.b16 %v126
    %v309 = vunpack.c.l.b16 %v127
    %v310 = vunpack.c.h.b16 %v127
    %v311 = vunpack.c.l.b16 %v128
    %v312 = vunpack.c.l.b16 %v129
    %v313 = vunpack.c.h.b16 %v129
    %v314 = vunpack.c.l.b16 %v130
    %v315 = vunpack.c.l.b16 %v131
    %v316 = vunpack.c.h.b16 %v131
    %v317 = vunpack.c.l.b16 %v132
    %v318 = vunpack.c.l.b16 %v133
    %v319 = vunpack.c.h.b16 %v133
    %v320 = vunpack.c.l.b16 %v134
    %v321 = vunpack.c.l.b16 %v135
    %v322 = vunpack.c.h.b16 %v135
    %v323 = vunpack.c.l.b16 %v136
    %v324 = vunpack.c.l.b16 %v137
    %v325 = vunpack.c.h.b16 %v137
    %v326 = vunpack.c.l.b16 %v138
    %v327 = vunpack.c.l.b16 %v139
    %v328 = vunpack.c.h.b16 %v139
    %v329 = vunpack.c.l.b16 %v140
    %v330 = vunpack.c.l.b16 %v141
    %v331 = vunpack.c.h.b16 %v141
    %v332 = vunpack.c.l.b16 %v142
    %v333 = vunpack.c.l.b16 %v143
    %v334 = vunpack.c.h.b16 %v143
    %v335 = vunpack.c.l.b16 %v144
    %v336 = vunpack.c.l.b16 %v145
    %v337 = vunpack.c.h.b16 %v145
    %v338 = vunpack.c.l.b16 %v146
    %v339 = vunpack.c.l.b16 %v147
    %v340 = vunpack.c.h.b16 %v147
    %v341 = vunpack.c.l.b16 %v148
    %v342 = vunpack.c.l.b16 %v149
    %v343 = vunpack.c.h.b16 %v149
    %v344 = vunpack.c.l.b16 %v150
    %v345 = vunpack.c.l.b16 %v151
    %v346 = vunpack.c.h.b16 %v151
    %v347 = vunpack.c.l.b16 %v152
    %v348 = vunpack.c.l.b16 %v153
    %v349 = vunpack.c.h.b16 %v153
    %v350 = vunpack.c.l.b16 %v154
    %v351 = vunpack.c.l.b16 %v155
    %v352 = vunpack.c.h.b16 %v155
    %v353 = vunpack.c.l.b16 %v156
    %v354 = vunpack.c.l.b16 %v157
    %v355 = vunpack.c.h.b16 %v157
    %v356 = vunpack.c.l.b16 %v158
    %v357 = vunpack.c.l.b16 %v159
    %v358 = vunpack.c.h.b16 %v159
    %v359 = vunpack.c.l.b16 %v160
    %v360 = vunpack.c.l.b16 %v161
    %v361 = vunpack.c.h.b16 %v161
    %v362 = vunpack.c.l.b16 %v162
    %v363 = vunpack.c.l.b16 %v163
    %v364 = vunpack.c.h.b16 %v163
    %v365 = vunpack.c.l.b16 %v164
    %v366 = vunpack.c.l.b16 %v165
    %v367 = vunpack.c.h.b16 %v165
    %v368 = vunpack.c.l.b16 %v166
    %v369 = vunpack.c.l.b16 %v167
    %v370 = vunpack.c.h.b16 %v167
    %v371 = vunpack.c.l.b16 %v168
    %v372 = vunpack.c.l.b16 %v169
    %v373 = vunpack.c.h.b16 %v169
    %v374 = vunpack.c.l.b16 %v170
    %v375 = vunpack.c.l.b16 %v171
    %v376 = vunpack.c.h.b16 %v171
    %v377 = vunpack.c.l.b16 %v172
    %v378 = vunpack.c.l.b16 %v173
    %v379 = vunpack.c.h.b16 %v173
    %v380 = vunpack.c.l.b16 %v174
    %v381 = vunpack.c.l.b16 %v175
    %v382 = vunpack.c.h.b16 %v175
    %v383 = vunpack.c.l.b16 %v176
    %v384 = vunpack.c.l.b16 %v177
    %v385 = vunpack.c.h.b16 %v177
    %v386 = vunpack.c.l.b16 %v178
    %v387 = vpack.c.b16 %v294, %v291
    %v388 = vpack.c.b16 %v295, %v292
    %v389 = vpack.c.b16 %v296, %v293
    %v390 = vpack.c.b16 %v300, %v297
    %v391 = vpack.c.b16 %v301, %v298
    %v392 = vpack.c.b16 %v302, %v299
    %v393 = vpack.c.b16 %v306, %v303
    %v394 = vpack.c.b16 %v307, %v304
    %v395 = vpack.c.b16 %v308, %v305
    %v396 = vpack.c.b16 %v312, %v309
    %v397 = vpack.c.b16 %v313, %v310
    %v398 = vpack.c.b16 %v314, %v311
    %v399 = vpack.c.b16 %v318, %v315
    %v400 = vpack.c.b16 %v319, %v316
    %v401 = vpack.c.b16 %v320, %v317
    %v402 = vpack.c.b16 %v324, %v321
    %v403 = vpack.c.b16 %v325, %v322
    %v404 = vpack.c.b16 %v326, %v323
    %v405 = vpack.c.b16 %v330, %v327
    %v406 = vpack.c.b16 %v331, %v328
    %v407 = vpack.c.b16 %v332, %v329
    %v408 = vpack.c.b16 %v336, %v333
    %v409 = vpack.c.b16 %v337, %v334
    %v410 = vpack.c.b16 %v338, %v335
    %v411 = vpack.c.b16 %v342, %v339
    %v412 = vpack.c.b16 %v343, %v340
    %v413 = vpack.c.b16 %v344, %v341
    %v414 = vpack.c.b16 %v348, %v345
    %v415 = vpack.c.b16 %v349, %v346
    %v416 = vpack.c.b16 %v350, %v347
    %v417 = vpack.c.b16 %v354, %v351
    %v418 = vpack.c.b16 %v355, %v352
    %v419 = vpack.c.b16 %v356, %v353
    %v420 = vpack.c.b16 %v360, %v357
    %v421 = vpack.c.b16 %v361, %v358
    %v422 = vpack.c.b16 %v362, %v359
    %v423 = vpack.c.b16 %v366, %v363
    %v424 = vpack.c.b16 %v367, %v364
    %v425 = vpack.c.b16 %v368, %v365
    %v426 = vpack.c.b16 %v372, %v369
    %v427 = vpack.c.b16 %v373, %v370
    %v428 = vpack.c.b16 %v374, %v371
    %v429 = vpack.c.b16 %v378, %v375
    %v430 = vpack.c.b16 %v379, %v376
    %v431 = vpack.c.b16 %v380, %v377
    %v432 = vpack.c.b16 %v384, %v381
    %v433 = vpack.c.b16 %v385, %v382
    %v434 = vpack.c.b16 %v386, %v383
    %v531 = vunpack.c.l.b16 %v179
    %v532 = vunpack.c.l.b16 %v180
    %v533 = vunpack.c.l.b16 %v181
    %v534 = vunpack.c.l.b16 %v182
    %v535 = vunpack.c.l.b16 %v183
    %v536 = vunpack.c.l.b16 %v184
    %v537 = vunpack.c.l.b16 %v185
    %v538 = vunpack.c.l.b16 %v186
    %v539 = vunpack.c.l.b16 %v187
    %v540 = vunpack.c.l.b16 %v188
    %v541 = vunpack.c.l.b16 %v189
    %v542 = vunpack.c.l.b16 %v190
    %v543 = vunpack.c.l.b16 %v191
    %v544 = vunpack.c.l.b16 %v192
    %v545 = vunpack.c.l.b16 %v193
    %v546 = vunpack.c.l.b16 %v194
    %v547 = vunpack.c.l.b16 %v195
    %v548 = vunpack.c.l.b16 %v196
    %v549 = vunpack.c.l.b16 %v197
    %v550 = vunpack.c.l.b16 %v198
    %v551 = vunpack.c.l.b16 %v199
    %v552 = vunpack.c.l.b16 %v200
    %v553 = vunpack.c.l.b16 %v201
    %v554 = vunpack.c.l.b16 %v202
    %v555 = vunpack.c.l.b16 %v203
    %v556 = vunpack.c.l.b16 %v204
    %v557 = vunpack.c.l.b16 %v205
    %v558 = vunpack.c.l.b16 %v206
    %v559 = vunpack.c.l.b16 %v207
    %v560 = vunpack.c.l.b16 %v208
    %v561 = vunpack.c.l.b16 %v209
    %v562 = vunpack.c.l.b16 %v210
    %v563 = vunpack.c.l.b16 %v211
    %v564 = vunpack.c.l.b16 %v212
    %v565 = vunpack.c.l.b16 %v213
    %v566 = vunpack.c.l.b16 %v214
    %v567 = vunpack.c.l.b16 %v215
    %v568 = vunpack.c.l.b16 %v216
    %v569 = vunpack.c.l.b16 %v217
    %v570 = vunpack.c.l.b16 %v218
    %v571 = vunpack.c.l.b16 %v219
    %v572 = vunpack.c.l.b16 %v220
    %v573 = vunpack.c.l.b16 %v221
    %v574 = vunpack.c.l.b16 %v222
    %v575 = vunpack.c.l.b16 %v223
    %v576 = vunpack.c.l.b16 %v224
    %v577 = vunpack.c.l.b16 %v225
    %v578 = vunpack.c.l.b16 %v226
    %v579 = vpack.c.b16 %v532, %v531
    %v580 = vpack.c.b16 %v534, %v533
    %v581 = vpack.c.b16 %v536, %v535
    %v582 = vpack.c.b16 %v538, %v537
    %v583 = vpack.c.b16 %v540, %v539
    %v584 = vpack.c.b16 %v542, %v541
    %v585 = vpack.c.b16 %v544, %v543
    %v586 = vpack.c.b16 %v546, %v545
    %v587 = vpack.c.b16 %v548, %v547
    %v588 = vpack.c.b16 %v550, %v549
    %v589 = vpack.c.b16 %v552, %v551
    %v590 = vpack.c.b16 %v554, %v553
    %v591 = vpack.c.b16 %v556, %v555
    %v592 = vpack.c.b16 %v558, %v557
    %v593 = vpack.c.b16 %v560, %v559
    %v594 = vpack.c.b16 %v562, %v561
    %v595 = vpack.c.b16 %v564, %v563
    %v596 = vpack.c.b16 %v566, %v565
    %v597 = vpack.c.b16 %v568, %v567
    %v598 = vpack.c.b16 %v570, %v569
    %v599 = vpack.c.b16 %v572, %v571
    %v600 = vpack.c.b16 %v574, %v573
    %v601 = vpack.c.b16 %v576, %v575
    %v602 = vpack.c.b16 %v578, %v577
    %627 = vmatprep.subr.bf16.mxu0 0
    %628 = vmatpush1.bf16.msra.mxu0 %v586
    %629 = vmatprep.subr.bf16.mxu0 0
    %630 = vmatpush1.bf16.msra.mxu0 %v585
    %631 = vmatprep.subr.bf16.mxu0 0
    %632 = vmatpush1.bf16.msra.mxu0 %v584
    %633 = vmatprep.subr.bf16.mxu0 0
    %634 = vmatpush1.bf16.msra.mxu0 %v583
    %635 = vmatprep.subr.bf16.mxu0 0
    %636 = vmatpush1.bf16.msra.mxu0 %v582
    %637 = vmatprep.subr.bf16.mxu0 0
    %638 = vmatpush1.bf16.msra.mxu0 %v581
    %639 = vmatprep.subr.bf16.mxu0 0
    %640 = vmatpush1.bf16.msra.mxu0 %v580
    %641 = vmatprep.subr.bf16.mxu0 0
    %642 = vmatpush1.bf16.msra.mxu0 %v579
    %643 = vmatprep.subr.bf16.mxu0 0
    %644 = vmatpush2.bf16.msra.mxu0 %v594
    %645 = vmatprep.subr.bf16.mxu0 0
    %646 = vmatpush2.bf16.msra.mxu0 %v593
    %647 = vmatprep.subr.bf16.mxu0 0
    %648 = vmatpush2.bf16.msra.mxu0 %v592
    %649 = vmatprep.subr.bf16.mxu0 0
    %650 = vmatpush2.bf16.msra.mxu0 %v591
    %651 = vmatprep.subr.bf16.mxu0 0
    %652 = vmatpush2.bf16.msra.mxu0 %v590
    %653 = vmatprep.subr.bf16.mxu0 0
    %654 = vmatpush2.bf16.msra.mxu0 %v589
    %655 = vmatprep.subr.bf16.mxu0 0
    %656 = vmatpush2.bf16.msra.mxu0 %v588
    %657 = vmatprep.subr.bf16.mxu0 0
    %658 = vmatpush2.bf16.msra.mxu0 %v587
    %659 = vmatprep.mubr.bf16.mxu0 %v388
    %660 = vmatmul.mubr.bf16.gmra.mxu0 %v387
    %v661 = vpop.f32.mrf.mxu0
    %v662 = vadd.f32 0.0, %v661
    %v663 = vpop.f32.mrf.mxu0
    %v664 = vpop.f32.mrf.mxu0
    %v665 = vadd.f32 0.0, %v664
    %v666 = vpop.f32.mrf.mxu0
    %667 = vmatprep.mubr.bf16.mxu0 %v391
    %668 = vmatmul.mubr.bf16.gmra.mxu0 %v390
    %v669 = vpop.f32.mrf.mxu0
    %v670 = vadd.f32 0.0, %v669
    %v671 = vpop.f32.mrf.mxu0
    %v672 = vpop.f32.mrf.mxu0
    %v673 = vadd.f32 0.0, %v672
    %v674 = vpop.f32.mrf.mxu0
    %675 = vmatprep.mubr.bf16.mxu0 %v394
    %676 = vmatmul.mubr.bf16.gmra.mxu0 %v393
    %v677 = vpop.f32.mrf.mxu0
    %v678 = vadd.f32 0.0, %v677
    %v679 = vpop.f32.mrf.mxu0
    %v680 = vpop.f32.mrf.mxu0
    %v681 = vadd.f32 0.0, %v680
    %v682 = vpop.f32.mrf.mxu0
    %683 = vmatprep.mubr.bf16.mxu0 %v397
    %684 = vmatmul.mubr.bf16.gmra.mxu0 %v396
    %v685 = vpop.f32.mrf.mxu0
    %v686 = vadd.f32 0.0, %v685
    %v687 = vpop.f32.mrf.mxu0
    %v688 = vpop.f32.mrf.mxu0
    %v689 = vadd.f32 0.0, %v688
    %v690 = vpop.f32.mrf.mxu0
    %691 = vmatprep.mubr.bf16.mxu0 %v400
    %692 = vmatmul.mubr.bf16.gmra.mxu0 %v399
    %v693 = vpop.f32.mrf.mxu0
    %v694 = vadd.f32 0.0, %v693
    %v695 = vpop.f32.mrf.mxu0
    %v696 = vpop.f32.mrf.mxu0
    %v697 = vadd.f32 0.0, %v696
    %v698 = vpop.f32.mrf.mxu0
    %699 = vmatprep.mubr.bf16.mxu0 %v403
    %700 = vmatmul.mubr.bf16.gmra.mxu0 %v402
    %v701 = vpop.f32.mrf.mxu0
    %v702 = vadd.f32 0.0, %v701
    %v703 = vpop.f32.mrf.mxu0
    %v704 = vpop.f32.mrf.mxu0
    %v705 = vadd.f32 0.0, %v704
    %v706 = vpop.f32.mrf.mxu0
    %707 = vmatprep.mubr.bf16.mxu0 %v406
    %708 = vmatmul.mubr.bf16.gmra.mxu0 %v405
    %v709 = vpop.f32.mrf.mxu0
    %v710 = vadd.f32 0.0, %v709
    %v711 = vpop.f32.mrf.mxu0
    %v712 = vpop.f32.mrf.mxu0
    %v713 = vadd.f32 0.0, %v712
    %v714 = vpop.f32.mrf.mxu0
    %715 = vmatprep.mubr.bf16.mxu0 %v409
    %716 = vmatmul.mubr.bf16.gmra.mxu0 %v408
    %v717 = vpop.f32.mrf.mxu0
    %v718 = vadd.f32 0.0, %v717
    %v719 = vpop.f32.mrf.mxu0
    %v720 = vpop.f32.mrf.mxu0
    %v721 = vadd.f32 0.0, %v720
    %v722 = vpop.f32.mrf.mxu0
    %723 = vmatprep.mubr.bf16.mxu0 %v412
    %724 = vmatmul.mubr.bf16.gmra.mxu0 %v411
    %v725 = vpop.f32.mrf.mxu0
    %v726 = vadd.f32 0.0, %v725
    %v727 = vpop.f32.mrf.mxu0
    %v728 = vpop.f32.mrf.mxu0
    %v729 = vadd.f32 0.0, %v728
    %v730 = vpop.f32.mrf.mxu0
    %731 = vmatprep.mubr.bf16.mxu0 %v415
    %732 = vmatmul.mubr.bf16.gmra.mxu0 %v414
    %v733 = vpop.f32.mrf.mxu0
    %v734 = vadd.f32 0.0, %v733
    %v735 = vpop.f32.mrf.mxu0
    %v736 = vpop.f32.mrf.mxu0
    %v737 = vadd.f32 0.0, %v736
    %v738 = vpop.f32.mrf.mxu0
    %739 = vmatprep.mubr.bf16.mxu0 %v418
    %740 = vmatmul.mubr.bf16.gmra.mxu0 %v417
    %v741 = vpop.f32.mrf.mxu0
    %v742 = vadd.f32 0.0, %v741
    %v743 = vpop.f32.mrf.mxu0
    %v744 = vpop.f32.mrf.mxu0
    %v745 = vadd.f32 0.0, %v744
    %v746 = vpop.f32.mrf.mxu0
    %747 = vmatprep.mubr.bf16.mxu0 %v421
    %748 = vmatmul.mubr.bf16.gmra.mxu0 %v420
    %v749 = vpop.f32.mrf.mxu0
    %v750 = vadd.f32 0.0, %v749
    %v751 = vpop.f32.mrf.mxu0
    %v752 = vpop.f32.mrf.mxu0
    %v753 = vadd.f32 0.0, %v752
    %v754 = vpop.f32.mrf.mxu0
    %755 = vmatprep.mubr.bf16.mxu0 %v424
    %756 = vmatmul.mubr.bf16.gmra.mxu0 %v423
    %v757 = vpop.f32.mrf.mxu0
    %v758 = vadd.f32 0.0, %v757
    %v759 = vpop.f32.mrf.mxu0
    %v760 = vpop.f32.mrf.mxu0
    %v761 = vadd.f32 0.0, %v760
    %v762 = vpop.f32.mrf.mxu0
    %763 = vmatprep.mubr.bf16.mxu0 %v427
    %764 = vmatmul.mubr.bf16.gmra.mxu0 %v426
    %v765 = vpop.f32.mrf.mxu0
    %v766 = vadd.f32 0.0, %v765
    %v767 = vpop.f32.mrf.mxu0
    %v768 = vpop.f32.mrf.mxu0
    %v769 = vadd.f32 0.0, %v768
    %v770 = vpop.f32.mrf.mxu0
    %771 = vmatprep.mubr.bf16.mxu0 %v430
    %772 = vmatmul.mubr.bf16.gmra.mxu0 %v429
    %v773 = vpop.f32.mrf.mxu0
    %v774 = vadd.f32 0.0, %v773
    %v775 = vpop.f32.mrf.mxu0
    %v776 = vpop.f32.mrf.mxu0
    %v777 = vadd.f32 0.0, %v776
    %v778 = vpop.f32.mrf.mxu0
    %779 = vmatprep.mubr.bf16.mxu0 %v433
    %780 = vmatmul.mubr.bf16.gmra.mxu0 %v432
    %v781 = vpop.f32.mrf.mxu0
    %v782 = vadd.f32 0.0, %v781
    %v783 = vpop.f32.mrf.mxu0
    %v784 = vpop.f32.mrf.mxu0
    %v785 = vadd.f32 0.0, %v784
    %v786 = vpop.f32.mrf.mxu0
    %787 = vdwg.mxu0
    %788 = vmatprep.subr.bf16.mxu0 0
    %789 = vmatpush1.bf16.msra.mxu0 %v602
    %790 = vmatprep.subr.bf16.mxu0 0
    %791 = vmatpush1.bf16.msra.mxu0 %v601
    %792 = vmatprep.subr.bf16.mxu0 0
    %793 = vmatpush1.bf16.msra.mxu0 %v600
    %794 = vmatprep.subr.bf16.mxu0 0
    %795 = vmatpush1.bf16.msra.mxu0 %v599
    %796 = vmatprep.subr.bf16.mxu0 0
    %797 = vmatpush1.bf16.msra.mxu0 %v598
    %798 = vmatprep.subr.bf16.mxu0 0
    %799 = vmatpush1.bf16.msra.mxu0 %v597
    %800 = vmatprep.subr.bf16.mxu0 0
    %801 = vmatpush1.bf16.msra.mxu0 %v596
    %802 = vmatprep.subr.bf16.mxu0 0
    %803 = vmatpush1.bf16.msra.mxu0 %v595
    %804 = vmatprep.subr.bf16.mxu0 0
    %805 = vmatpush2.bf16.msra.mxu0 0
    %806 = vmatprep.subr.bf16.mxu0 0
    %807 = vmatpush2.bf16.msra.mxu0 0
    %808 = vmatprep.subr.bf16.mxu0 0
    %809 = vmatpush2.bf16.msra.mxu0 0
    %810 = vmatprep.subr.bf16.mxu0 0
    %811 = vmatpush2.bf16.msra.mxu0 0
    %812 = vmatprep.subr.bf16.mxu0 0
    %813 = vmatpush2.bf16.msra.mxu0 0
    %814 = vmatprep.subr.bf16.mxu0 0
    %815 = vmatpush2.bf16.msra.mxu0 0
    %816 = vmatprep.subr.bf16.mxu0 0
    %817 = vmatpush2.bf16.msra.mxu0 0
    %818 = vmatprep.subr.bf16.mxu0 0
    %819 = vmatpush2.bf16.msra.mxu0 0
    %820 = vmatprep.mubr.bf16.mxu0 0
    %821 = vmatmul.mubr.bf16.gmra.mxu0 %v389
    %v822 = vpop.f32.mrf.mxu0
    %v823 = vadd.f32 %v662, %v822
    %v824 = vpop.f32.mrf.mxu0
    %v825 = vpop.f32.mrf.mxu0
    %v826 = vadd.f32 %v665, %v825
    %v827 = vpop.f32.mrf.mxu0
    %828 = vmatprep.mubr.bf16.mxu0 0
    %829 = vmatmul.mubr.bf16.gmra.mxu0 %v392
    %v830 = vpop.f32.mrf.mxu0
    %v831 = vadd.f32 %v670, %v830
    %v832 = vpop.f32.mrf.mxu0
    %v833 = vpop.f32.mrf.mxu0
    %v834 = vadd.f32 %v673, %v833
    %v835 = vpop.f32.mrf.mxu0
    %836 = vmatprep.mubr.bf16.mxu0 0
    %837 = vmatmul.mubr.bf16.gmra.mxu0 %v395
    %v838 = vpop.f32.mrf.mxu0
    %v839 = vadd.f32 %v678, %v838
    %v840 = vpop.f32.mrf.mxu0
    %v841 = vpop.f32.mrf.mxu0
    %v842 = vadd.f32 %v681, %v841
    %v843 = vpop.f32.mrf.mxu0
    %844 = vmatprep.mubr.bf16.mxu0 0
    %845 = vmatmul.mubr.bf16.gmra.mxu0 %v398
    %v846 = vpop.f32.mrf.mxu0
    %v847 = vadd.f32 %v686, %v846
    %v848 = vpop.f32.mrf.mxu0
    %v849 = vpop.f32.mrf.mxu0
    %v850 = vadd.f32 %v689, %v849
    %v851 = vpop.f32.mrf.mxu0
    %852 = vmatprep.mubr.bf16.mxu0 0
    %853 = vmatmul.mubr.bf16.gmra.mxu0 %v401
    %v854 = vpop.f32.mrf.mxu0
    %v855 = vadd.f32 %v694, %v854
    %v856 = vpop.f32.mrf.mxu0
    %v857 = vpop.f32.mrf.mxu0
    %v858 = vadd.f32 %v697, %v857
    %v859 = vpop.f32.mrf.mxu0
    %860 = vmatprep.mubr.bf16.mxu0 0
    %861 = vmatmul.mubr.bf16.gmra.mxu0 %v404
    %v862 = vpop.f32.mrf.mxu0
    %v863 = vadd.f32 %v702, %v862
    %v864 = vpop.f32.mrf.mxu0
    %v865 = vpop.f32.mrf.mxu0
    %v866 = vadd.f32 %v705, %v865
    %v867 = vpop.f32.mrf.mxu0
    %868 = vmatprep.mubr.bf16.mxu0 0
    %869 = vmatmul.mubr.bf16.gmra.mxu0 %v407
    %v870 = vpop.f32.mrf.mxu0
    %v871 = vadd.f32 %v710, %v870
    %v872 = vpop.f32.mrf.mxu0
    %v873 = vpop.f32.mrf.mxu0
    %v874 = vadd.f32 %v713, %v873
    %v875 = vpop.f32.mrf.mxu0
    %876 = vmatprep.mubr.bf16.mxu0 0
    %877 = vmatmul.mubr.bf16.gmra.mxu0 %v410
    %v878 = vpop.f32.mrf.mxu0
    %v879 = vadd.f32 %v718, %v878
    %v880 = vpop.f32.mrf.mxu0
    %v881 = vpop.f32.mrf.mxu0
    %v882 = vadd.f32 %v721, %v881
    %v883 = vpop.f32.mrf.mxu0
    %884 = vmatprep.mubr.bf16.mxu0 0
    %885 = vmatmul.mubr.bf16.gmra.mxu0 %v413
    %v886 = vpop.f32.mrf.mxu0
    %v887 = vadd.f32 %v726, %v886
    %v888 = vpop.f32.mrf.mxu0
    %v889 = vpop.f32.mrf.mxu0
    %v890 = vadd.f32 %v729, %v889
    %v891 = vpop.f32.mrf.mxu0
    %892 = vmatprep.mubr.bf16.mxu0 0
    %893 = vmatmul.mubr.bf16.gmra.mxu0 %v416
    %v894 = vpop.f32.mrf.mxu0
    %v895 = vadd.f32 %v734, %v894
    %v896 = vpop.f32.mrf.mxu0
    %v897 = vpop.f32.mrf.mxu0
    %v898 = vadd.f32 %v737, %v897
    %v899 = vpop.f32.mrf.mxu0
    %900 = vmatprep.mubr.bf16.mxu0 0
    %901 = vmatmul.mubr.bf16.gmra.mxu0 %v419
    %v902 = vpop.f32.mrf.mxu0
    %v903 = vadd.f32 %v742, %v902
    %v904 = vpop.f32.mrf.mxu0
    %v905 = vpop.f32.mrf.mxu0
    %v906 = vadd.f32 %v745, %v905
    %v907 = vpop.f32.mrf.mxu0
    %908 = vmatprep.mubr.bf16.mxu0 0
    %909 = vmatmul.mubr.bf16.gmra.mxu0 %v422
    %v910 = vpop.f32.mrf.mxu0
    %v911 = vadd.f32 %v750, %v910
    %v912 = vpop.f32.mrf.mxu0
    %v913 = vpop.f32.mrf.mxu0
    %v914 = vadd.f32 %v753, %v913
    %v915 = vpop.f32.mrf.mxu0
    %916 = vmatprep.mubr.bf16.mxu0 0
    %917 = vmatmul.mubr.bf16.gmra.mxu0 %v425
    %v918 = vpop.f32.mrf.mxu0
    %v919 = vadd.f32 %v758, %v918
    %v920 = vpop.f32.mrf.mxu0
    %v921 = vpop.f32.mrf.mxu0
    %v922 = vadd.f32 %v761, %v921
    %v923 = vpop.f32.mrf.mxu0
    %924 = vmatprep.mubr.bf16.mxu0 0
    %925 = vmatmul.mubr.bf16.gmra.mxu0 %v428
    %v926 = vpop.f32.mrf.mxu0
    %v927 = vadd.f32 %v766, %v926
    %v928 = vpop.f32.mrf.mxu0
    %v929 = vpop.f32.mrf.mxu0
    %v930 = vadd.f32 %v769, %v929
    %v931 = vpop.f32.mrf.mxu0
    %932 = vmatprep.mubr.bf16.mxu0 0
    %933 = vmatmul.mubr.bf16.gmra.mxu0 %v431
    %v934 = vpop.f32.mrf.mxu0
    %v935 = vadd.f32 %v774, %v934
    %v936 = vpop.f32.mrf.mxu0
    %v937 = vpop.f32.mrf.mxu0
    %v938 = vadd.f32 %v777, %v937
    %v939 = vpop.f32.mrf.mxu0
    %940 = vmatprep.mubr.bf16.mxu0 0
    %941 = vmatmul.mubr.bf16.gmra.mxu0 %v434
    %v942 = vpop.f32.mrf.mxu0
    %v943 = vadd.f32 %v782, %v942
    %v944 = vpop.f32.mrf.mxu0
    %v945 = vpop.f32.mrf.mxu0
    %v946 = vadd.f32 %v785, %v945
    %v947 = vpop.f32.mrf.mxu0
    %948 = vdwg.mxu0
    %v949 = vadd.f32 %v83, %v823
    %v950 = vadd.f32 %v84, %v826
    %v951 = vadd.f32 %v85, %v831
    %v952 = vadd.f32 %v86, %v834
    %v953 = vadd.f32 %v87, %v839
    %v954 = vadd.f32 %v88, %v842
    %v955 = vadd.f32 %v89, %v847
    %v956 = vadd.f32 %v90, %v850
    %v957 = vadd.f32 %v91, %v855
    %v958 = vadd.f32 %v92, %v858
    %v959 = vadd.f32 %v93, %v863
    %v960 = vadd.f32 %v94, %v866
    %v961 = vadd.f32 %v95, %v871
    %v962 = vadd.f32 %v96, %v874
    %v963 = vadd.f32 %v97, %v879
    %v964 = vadd.f32 %v98, %v882
    %v965 = vadd.f32 %v99, %v887
    %v966 = vadd.f32 %v100, %v890
    %v967 = vadd.f32 %v101, %v895
    %v968 = vadd.f32 %v102, %v898
    %v969 = vadd.f32 %v103, %v903
    %v970 = vadd.f32 %v104, %v906
    %v971 = vadd.f32 %v105, %v911
    %v972 = vadd.f32 %v106, %v914
    %v973 = vadd.f32 %v107, %v919
    %v974 = vadd.f32 %v108, %v922
    %v975 = vadd.f32 %v109, %v927
    %v976 = vadd.f32 %v110, %v930
    %v977 = vadd.f32 %v111, %v935
    %v978 = vadd.f32 %v112, %v938
    %v979 = vadd.f32 %v113, %v943
    %v980 = vadd.f32 %v114, %v946
    %981 = vst [vmem:[#allocation2] sm:$0xff] %v949
    %982 = vst [vmem:[#allocation2 + $0x8] sm:$0xff] %v950
    %983 = vst [vmem:[#allocation2 + $0x10] sm:$0xff] %v951
    %984 = vst [vmem:[#allocation2 + $0x18] sm:$0xff] %v952
    %985 = vst [vmem:[#allocation2 + $0x20] sm:$0xff] %v953
    %986 = vst [vmem:[#allocation2 + $0x28] sm:$0xff] %v954
    %987 = vst [vmem:[#allocation2 + $0x30] sm:$0xff] %v955
    %988 = vst [vmem:[#allocation2 + $0x38] sm:$0xff] %v956
    %989 = vst [vmem:[#allocation2 + $0x40] sm:$0xff] %v957
    %990 = vst [vmem:[#allocation2 + $0x48] sm:$0xff] %v958
    %991 = vst [vmem:[#allocation2 + $0x50] sm:$0xff] %v959
    %992 = vst [vmem:[#allocation2 + $0x58] sm:$0xff] %v960
    %993 = vst [vmem:[#allocation2 + $0x60] sm:$0xff] %v961
    %994 = vst [vmem:[#allocation2 + $0x68] sm:$0xff] %v962
    %995 = vst [vmem:[#allocation2 + $0x70] sm:$0xff] %v963
    %996 = vst [vmem:[#allocation2 + $0x78] sm:$0xff] %v964
    %997 = vst [vmem:[#allocation2 + $0x80] sm:$0xff] %v965
    %998 = vst [vmem:[#allocation2 + $0x88] sm:$0xff] %v966
    %999 = vst [vmem:[#allocation2 + $0x90] sm:$0xff] %v967
    %1000 = vst [vmem:[#allocation2 + $0x98] sm:$0xff] %v968
    %1001 = vst [vmem:[#allocation2 + $0xa0] sm:$0xff] %v969
    %1002 = vst [vmem:[#allocation2 + $0xa8] sm:$0xff] %v970
    %1003 = vst [vmem:[#allocation2 + $0xb0] sm:$0xff] %v971
    %1004 = vst [vmem:[#allocation2 + $0xb8] sm:$0xff] %v972
    %1005 = vst [vmem:[#allocation2 + $0xc0] sm:$0xff] %v973
    %1006 = vst [vmem:[#allocation2 + $0xc8] sm:$0xff] %v974
    %1007 = vst [vmem:[#allocation2 + $0xd0] sm:$0xff] %v975
    %1008 = vst [vmem:[#allocation2 + $0xd8] sm:$0xff] %v976
    %1009 = vst [vmem:[#allocation2 + $0xe0] sm:$0xff] %v977
    %1010 = vst [vmem:[#allocation2 + $0xe8] sm:$0xff] %v978
    %1011 = vst [vmem:[#allocation2 + $0xf0] sm:$0xff] %v979
    %1012 = vst [vmem:[#allocation2 + $0xf8] sm:$0xff] %v980
    // Predicated region
    $region30: #{tpu_custom_call.1} parent=1 // pred_check
      %p1013 = pneg %p47
    $region31: #{tpu_custom_call.1} parent=1 // pred_check_branch
      %1015 = sbr.rel (%p1013) target = $region33
    $region32: #{tpu_custom_call.1} parent=1 // pred_region
      %v1016 = vld [vmem:[#allocation2] sm:$0xff]
      %v1017 = vld [vmem:[#allocation2 + $0x8] sm:$0xff]
      %v1018 = vld [vmem:[#allocation2 + $0x10] sm:$0xff]
      %v1019 = vld [vmem:[#allocation2 + $0x18] sm:$0xff]
      %v1020 = vld [vmem:[#allocation2 + $0x20] sm:$0xff]
      %v1021 = vld [vmem:[#allocation2 + $0x28] sm:$0xff]
      %v1022 = vld [vmem:[#allocation2 + $0x30] sm:$0xff]
      %v1023 = vld [vmem:[#allocation2 + $0x38] sm:$0xff]
      %v1024 = vld [vmem:[#allocation2 + $0x40] sm:$0xff]
      %v1025 = vld [vmem:[#allocation2 + $0x48] sm:$0xff]
      %v1026 = vld [vmem:[#allocation2 + $0x50] sm:$0xff]
      %v1027 = vld [vmem:[#allocation2 + $0x58] sm:$0xff]
      %v1028 = vld [vmem:[#allocation2 + $0x60] sm:$0xff]
      %v1029 = vld [vmem:[#allocation2 + $0x68] sm:$0xff]
      %v1030 = vld [vmem:[#allocation2 + $0x70] sm:$0xff]
      %v1031 = vld [vmem:[#allocation2 + $0x78] sm:$0xff]
      %v1032 = vld [vmem:[#allocation2 + $0x80] sm:$0xff]
      %v1033 = vld [vmem:[#allocation2 + $0x88] sm:$0xff]
      %v1034 = vld [vmem:[#allocation2 + $0x90] sm:$0xff]
      %v1035 = vld [vmem:[#allocation2 + $0x98] sm:$0xff]
      %v1036 = vld [vmem:[#allocation2 + $0xa0] sm:$0xff]
      %v1037 = vld [vmem:[#allocation2 + $0xa8] sm:$0xff]
      %v1038 = vld [vmem:[#allocation2 + $0xb0] sm:$0xff]
      %v1039 = vld [vmem:[#allocation2 + $0xb8] sm:$0xff]
      %v1040 = vld [vmem:[#allocation2 + $0xc0] sm:$0xff]
      %v1041 = vld [vmem:[#allocation2 + $0xc8] sm:$0xff]
      %v1042 = vld [vmem:[#allocation2 + $0xd0] sm:$0xff]
      %v1043 = vld [vmem:[#allocation2 + $0xd8] sm:$0xff]
      %v1044 = vld [vmem:[#allocation2 + $0xe0] sm:$0xff]
      %v1045 = vld [vmem:[#allocation2 + $0xe8] sm:$0xff]
      %v1046 = vld [vmem:[#allocation2 + $0xf0] sm:$0xff]
      %v1047 = vld [vmem:[#allocation2 + $0xf8] sm:$0xff]
      %v1048 = vld [vmem:[%s2] sm:$0x1]
      %v1050 = vlaneseq
      %v1051 = vshrl.u32 %v1050, 7
      %v1052 = vsub.s32 0, %v1051
      %v1053 = vrot.slane %v1048, %v1052
      %v1055 = vmul.f32 %v1016, %v1053
      %v1056 = vmul.f32 %v1017, %v1053
      %v1057 = vmul.f32 %v1018, %v1053
      %v1058 = vmul.f32 %v1019, %v1053
      %v1059 = vmul.f32 %v1020, %v1053
      %v1060 = vmul.f32 %v1021, %v1053
      %v1061 = vmul.f32 %v1022, %v1053
      %v1062 = vmul.f32 %v1023, %v1053
      %v1063 = vmul.f32 %v1024, %v1053
      %v1064 = vmul.f32 %v1025, %v1053
      %v1065 = vmul.f32 %v1026, %v1053
      %v1066 = vmul.f32 %v1027, %v1053
      %v1067 = vmul.f32 %v1028, %v1053
      %v1068 = vmul.f32 %v1029, %v1053
      %v1069 = vmul.f32 %v1030, %v1053
      %v1070 = vmul.f32 %v1031, %v1053
      %v1071 = vmul.f32 %v1032, %v1053
      %v1072 = vmul.f32 %v1033, %v1053
      %v1073 = vmul.f32 %v1034, %v1053
      %v1074 = vmul.f32 %v1035, %v1053
      %v1075 = vmul.f32 %v1036, %v1053
      %v1076 = vmul.f32 %v1037, %v1053
      %v1077 = vmul.f32 %v1038, %v1053
      %v1078 = vmul.f32 %v1039, %v1053
      %v1079 = vmul.f32 %v1040, %v1053
      %v1080 = vmul.f32 %v1041, %v1053
      %v1081 = vmul.f32 %v1042, %v1053
      %v1082 = vmul.f32 %v1043, %v1053
      %v1083 = vmul.f32 %v1044, %v1053
      %v1084 = vmul.f32 %v1045, %v1053
      %v1085 = vmul.f32 %v1046, %v1053
      %v1086 = vmul.f32 %v1047, %v1053
      %v1087 = vld [vmem:[%s3] sm:$0x1]
      %v1089 = vlaneseq
      %v1090 = vshrl.u32 %v1089, 7
      %v1091 = vsub.s32 0, %v1090
      %v1092 = vrot.slane %v1087, %v1091
      %v1094 = vadd.f32 %v1055, %v1092
      %v1095 = vadd.f32 %v1056, %v1092
      %v1096 = vadd.f32 %v1057, %v1092
      %v1097 = vadd.f32 %v1058, %v1092
      %v1098 = vadd.f32 %v1059, %v1092
      %v1099 = vadd.f32 %v1060, %v1092
      %v1100 = vadd.f32 %v1061, %v1092
      %v1101 = vadd.f32 %v1062, %v1092
      %v1102 = vadd.f32 %v1063, %v1092
      %v1103 = vadd.f32 %v1064, %v1092
      %v1104 = vadd.f32 %v1065, %v1092
      %v1105 = vadd.f32 %v1066, %v1092
      %v1106 = vadd.f32 %v1067, %v1092
      %v1107 = vadd.f32 %v1068, %v1092
      %v1108 = vadd.f32 %v1069, %v1092
      %v1109 = vadd.f32 %v1070, %v1092
      %v1110 = vadd.f32 %v1071, %v1092
      %v1111 = vadd.f32 %v1072, %v1092
      %v1112 = vadd.f32 %v1073, %v1092
      %v1113 = vadd.f32 %v1074, %v1092
      %v1114 = vadd.f32 %v1075, %v1092
      %v1115 = vadd.f32 %v1076, %v1092
      %v1116 = vadd.f32 %v1077, %v1092
      %v1117 = vadd.f32 %v1078, %v1092
      %v1118 = vadd.f32 %v1079, %v1092
      %v1119 = vadd.f32 %v1080, %v1092
      %v1120 = vadd.f32 %v1081, %v1092
      %v1121 = vadd.f32 %v1082, %v1092
      %v1122 = vadd.f32 %v1083, %v1092
      %v1123 = vadd.f32 %v1084, %v1092
      %v1124 = vadd.f32 %v1085, %v1092
      %v1125 = vadd.f32 %v1086, %v1092
      %v1126 = vmax.f32 %v1094, 0.0
      %v1127 = vmax.f32 %v1095, 0.0
      %v1128 = vmax.f32 %v1096, 0.0
      %v1129 = vmax.f32 %v1097, 0.0
      %v1130 = vmax.f32 %v1098, 0.0
      %v1131 = vmax.f32 %v1099, 0.0
      %v1132 = vmax.f32 %v1100, 0.0
      %v1133 = vmax.f32 %v1101, 0.0
      %v1134 = vmax.f32 %v1102, 0.0
      %v1135 = vmax.f32 %v1103, 0.0
      %v1136 = vmax.f32 %v1104, 0.0
      %v1137 = vmax.f32 %v1105, 0.0
      %v1138 = vmax.f32 %v1106, 0.0
      %v1139 = vmax.f32 %v1107, 0.0
      %v1140 = vmax.f32 %v1108, 0.0
      %v1141 = vmax.f32 %v1109, 0.0
      %v1142 = vmax.f32 %v1110, 0.0
      %v1143 = vmax.f32 %v1111, 0.0
      %v1144 = vmax.f32 %v1112, 0.0
      %v1145 = vmax.f32 %v1113, 0.0
      %v1146 = vmax.f32 %v1114, 0.0
      %v1147 = vmax.f32 %v1115, 0.0
      %v1148 = vmax.f32 %v1116, 0.0
      %v1149 = vmax.f32 %v1117, 0.0
      %v1150 = vmax.f32 %v1118, 0.0
      %v1151 = vmax.f32 %v1119, 0.0
      %v1152 = vmax.f32 %v1120, 0.0
      %v1153 = vmax.f32 %v1121, 0.0
      %v1154 = vmax.f32 %v1122, 0.0
      %v1155 = vmax.f32 %v1123, 0.0
      %v1156 = vmax.f32 %v1124, 0.0
      %v1157 = vmax.f32 %v1125, 0.0
      %1158 = vst [vmem:[#allocation8] sm:$0xff] %v1126
      %1159 = vst [vmem:[#allocation8 + $0x8] sm:$0xff] %v1127
      %1160 = vst [vmem:[#allocation8 + $0x10] sm:$0xff] %v1128
      %1161 = vst [vmem:[#allocation8 + $0x18] sm:$0xff] %v1129
      %1162 = vst [vmem:[#allocation8 + $0x20] sm:$0xff] %v1130
      %1163 = vst [vmem:[#allocation8 + $0x28] sm:$0xff] %v1131
      %1164 = vst [vmem:[#allocation8 + $0x30] sm:$0xff] %v1132
      %1165 = vst [vmem:[#allocation8 + $0x38] sm:$0xff] %v1133
      %1166 = vst [vmem:[#allocation8 + $0x40] sm:$0xff] %v1134
      %1167 = vst [vmem:[#allocation8 + $0x48] sm:$0xff] %v1135
      %1168 = vst [vmem:[#allocation8 + $0x50] sm:$0xff] %v1136
      %1169 = vst [vmem:[#allocation8 + $0x58] sm:$0xff] %v1137
      %1170 = vst [vmem:[#allocation8 + $0x60] sm:$0xff] %v1138
      %1171 = vst [vmem:[#allocation8 + $0x68] sm:$0xff] %v1139
      %1172 = vst [vmem:[#allocation8 + $0x70] sm:$0xff] %v1140
      %1173 = vst [vmem:[#allocation8 + $0x78] sm:$0xff] %v1141
      %1174 = vst [vmem:[#allocation8 + $0x80] sm:$0xff] %v1142
      %1175 = vst [vmem:[#allocation8 + $0x88] sm:$0xff] %v1143
      %1176 = vst [vmem:[#allocation8 + $0x90] sm:$0xff] %v1144
      %1177 = vst [vmem:[#allocation8 + $0x98] sm:$0xff] %v1145
      %1178 = vst [vmem:[#allocation8 + $0xa0] sm:$0xff] %v1146
      %1179 = vst [vmem:[#allocation8 + $0xa8] sm:$0xff] %v1147
      %1180 = vst [vmem:[#allocation8 + $0xb0] sm:$0xff] %v1148
      %1181 = vst [vmem:[#allocation8 + $0xb8] sm:$0xff] %v1149
      %1182 = vst [vmem:[#allocation8 + $0xc0] sm:$0xff] %v1150
      %1183 = vst [vmem:[#allocation8 + $0xc8] sm:$0xff] %v1151
      %1184 = vst [vmem:[#allocation8 + $0xd0] sm:$0xff] %v1152
      %1185 = vst [vmem:[#allocation8 + $0xd8] sm:$0xff] %v1153
      %1186 = vst [vmem:[#allocation8 + $0xe0] sm:$0xff] %v1154
      %1187 = vst [vmem:[#allocation8 + $0xe8] sm:$0xff] %v1155
      %1188 = vst [vmem:[#allocation8 + $0xf0] sm:$0xff] %v1156
      %1189 = vst [vmem:[#allocation8 + $0xf8] sm:$0xff] %v1157
    $region33: #{tpu_custom_call.1} parent=1 // pred_fallthru
      _
    // Predicated region
    $region34: #{tpu_custom_call.1} parent=1 // pred_check
      _
    $region35: #{tpu_custom_call.1} parent=1 // pred_check_branch
      %1191 = sbr.rel (0) target = $region37
    $region36: #{tpu_custom_call.1} parent=1 // pred_region
      %s1193 = ssub.s32 4096, 4096
      %1194 = vsyncadd [#allocation5], %s1193
      %s1195 = sshll.u32 [#allocation8], 4
      %s1196 = int_to_ptr.vmem [resolvable:$true] %s1195
      %1201 = dma.vmem_to_hbm [thread:$0]  %s1196, 4096, %s4, [#allocation5], 128, 128, 8
    $region37: #{tpu_custom_call.1} parent=1 // pred_fallthru
      _
    // Predicated region
    $region38: #{tpu_custom_call.1} parent=1 // pred_check
      _
    $region39: #{tpu_custom_call.1} parent=1 // pred_check_branch
      %1203 = sbr.rel (0) target = $region41
    $region40: #{tpu_custom_call.1} parent=1 // pred_region
      %1204 = dma.done [#allocation5], 4096
    $region41: #{tpu_custom_call.1} parent=1 // pred_fallthru
      _
    %1205 = vsyncpa [#allocation4], 1
    %1206 = vsyncpa [#allocation7], 1
    %1207 = vsyncpa [#allocation5], 1

</llo_original>
